<compile_context>
chip_gen: v7x
topology: tpu7x:2x2x1
jax: 0.10.0
libtpu: 0.0.40
codegen_flags: <defaults>
</compile_context>

<pallas_src>
import functools
import math

import jax
import jax.numpy as jnp
from jax import lax
from jax.experimental import pallas as pl
from jax.experimental.pallas import tpu as pltpu


def mqa_flash_kernel(q_ref, k_ref, v_ref, wot_ref, bo_ref, o_ref,
                     qh_sc, m_sc, l_sc, acc_sc, *, num_heads, tq):
    """Flash MQA core + fused output projection.

    Grid = (batch, query-tile, kv-tile); kv-tile is the sequential reduction
    axis (output block revisited across it).

      q_ref  : (1, H, tq, d_k) bf16 -- projected & pre-scaled Q, head-major
      k_ref  : (1, tkv, d_k)   bf16 -- projected K (shared by all heads)
      v_ref  : (1, tkv, d_k)   bf16 -- projected V (shared by all heads)
      wot_ref: (H, d_k, D)     bf16 -- o_proj weight, transposed, per head
      bo_ref : (1, D)          f32  -- o_proj bias
      o_ref  : (1, tq, D)
    """
    ki = pl.program_id(2)

    @pl.when(ki == 0)
    def _init():
        # Stack heads into the M/sublane dim once per query tile: rows
        # [h*tq, (h+1)*tq) hold head h.  Offsets are multiples of tq (>= 8),
        # so these are tile-aligned copies; the score / PV matmuls below then
        # run as single stacked MXU calls for ALL heads.
        for h in range(num_heads):
            qh_sc[h * tq:(h + 1) * tq, :] = q_ref[0, h]
        m_sc[...] = jnp.full_like(m_sc, -jnp.inf)
        l_sc[...] = jnp.zeros_like(l_sc)
        acc_sc[...] = jnp.zeros_like(acc_sc)

    kb = k_ref[0]                                   # (tkv, d_k) bf16
    vb = v_ref[0]                                   # (tkv, d_k) bf16

    # One stacked score matmul for ALL heads: (H*tq, d_k) x (tkv, d_k)^T.
    s = lax.dot_general(qh_sc[...], kb,
                        dimension_numbers=(((1,), (1,)), ((), ())),
                        preferred_element_type=jnp.float32)      # (H*tq, tkv)
    # TODO(synk): optional attention mask would be applied to `s` here.

    # Online softmax (flash pattern); statistics kept in f32.
    # TODO(synk): on v6e/v7x with d_k <= 64 the exp could run in bf16 on the
    # EUP; kept in f32 so the same kernel is correct on v5e.
    m_prev = m_sc[...]
    m_new = jnp.maximum(m_prev, jnp.max(s, axis=-1, keepdims=True))
    alpha = jnp.exp(m_prev - m_new)
    p = jnp.exp(s - m_new)
    l_sc[...] = alpha * l_sc[...] + jnp.sum(p, axis=-1, keepdims=True)
    acc_sc[...] = alpha * acc_sc[...] + jnp.dot(
        p.astype(jnp.bfloat16), vb, preferred_element_type=jnp.float32)
    m_sc[...] = m_new

    @pl.when(ki == pl.num_programs(2) - 1)
    def _finalize():
        # Normalize with the EUP reciprocal (keeps the divide off the VALU).
        ctx = acc_sc[...] * pl.reciprocal(l_sc[...], approx=True)  # (H*tq,d_k)
        # Fused output projection WITHOUT the lane-axis concat: accumulate the
        # per-head (tq, d_k) @ (d_k, D) contributions.  Sublane slices at
        # multiples of tq are tile-aligned; this runs once per query tile.
        out = jnp.dot(ctx[0:tq, :].astype(jnp.bfloat16), wot_ref[0],
                      preferred_element_type=jnp.float32)
        for h in range(1, num_heads):
            out = out + jnp.dot(
                ctx[h * tq:(h + 1) * tq, :].astype(jnp.bfloat16), wot_ref[h],
                preferred_element_type=jnp.float32)
        o_ref[0] = (out + bo_ref[...]).astype(o_ref.dtype)


def _pick_seq_tile(seq_len, preferred):
    """Largest multiple-of-8 tile <= `preferred` that divides `seq_len`."""
    if seq_len <= preferred:
        return seq_len
    t = preferred - preferred % 8
    while t >= 8:
        if seq_len % t == 0:
            return t
        t -= 8
    # TODO(synk): pad + mask ragged sequence lengths instead of raising; the
    # old silent full-S fallback materialized O(S^2) f32 intermediates.
    raise ValueError(
        f"sequence length {seq_len} has no multiple-of-8 tile <= {preferred}; "
        "pad the sequence to a multiple of 8")


def _const_block_spec(shape):
    """Constant-index (weight/bias) block; single-buffered when supported."""
    index_map = lambda b, qi, ki: (0,) * len(shape)
    try:
        # The block index never changes, so double-buffering it only wastes
        # VMEM (matters most under v7x's 64 MiB VMEM).
        return pl.BlockSpec(shape, index_map, pipeline_mode=pl.Buffered(1))
    except (AttributeError, TypeError):   # older jax without pipeline_mode
        return pl.BlockSpec(shape, index_map)


def multi_query_attention(q, k, v, wq, wk, wv, wo, bo, *, num_heads):
    """Forward pass of the PyTorch MultiQueryAttention module (mask=None)."""
    B, S, D = q.shape
    assert D % num_heads == 0, "d_model must be divisible by num_heads"
    d_k = D // num_heads
    out_dtype = q.dtype

    # ---- Tile sizes -------------------------------------------------------
    # Cap H*tq (rows of the stacked-head score matrix) so the f32 (H*tq, tkv)
    # intermediates + accumulator fit v7x VMEM, while keeping B*(S//tq) >= 2
    # so both v7x TensorCores get work.
    preferred_tq = max(128, min(256, 2048 // num_heads))
    tq = _pick_seq_tile(S, preferred_tq)
    tkv = _pick_seq_tile(S, 512)

    # ---- Hoisted projections (plain GEMMs; XLA runs them at roofline) ------
    scale = 1.0 / math.sqrt(d_k)
    wqt = (wq.T * scale).astype(jnp.bfloat16)                     # (D, D)
    wkt = wk.T.astype(jnp.bfloat16)                               # (D, d_k)
    wvt = wv.T.astype(jnp.bfloat16)                               # (D, d_k)
    wot = wo.T.reshape(num_heads, d_k, D).astype(jnp.bfloat16)    # (H, d_k, D)
    bo2d = bo.reshape(1, D).astype(jnp.float32)

    # Q: one full-width GEMM + head-major relayout done once, outside the
    # kernel's kv loop.
    qp = jnp.dot(q.astype(jnp.bfloat16), wqt,
                 preferred_element_type=jnp.float32)
    qp = qp.reshape(B, S, num_heads, d_k).transpose(0, 2, 1, 3)   # (B,H,S,d_k)
    qp = qp.astype(jnp.bfloat16)
    # K/V: shared by all heads (multi-query).  Computing them once here
    # (instead of per query tile inside the kernel) removes the redundant MXU
    # work and shrinks KV HBM traffic by D/d_k = H x.
    kp = jnp.dot(k.astype(jnp.bfloat16), wkt,
                 preferred_element_type=jnp.float32).astype(jnp.bfloat16)
    vp = jnp.dot(v.astype(jnp.bfloat16), wvt,
                 preferred_element_type=jnp.float32).astype(jnp.bfloat16)

    # ---- VMEM budget: ~75% of physical VMEM, capped at 100 MiB -------------
    try:
        vmem_cap = pltpu.get_tpu_info().vmem_capacity_bytes
    except Exception:  # conservative (v7x-sized) fallback
        vmem_cap = 64 * 1024 * 1024
    vmem_limit = int(min((vmem_cap * 3) // 4, 100 * 1024 * 1024))

    kernel = functools.partial(mqa_flash_kernel, num_heads=num_heads, tq=tq)

    return pl.pallas_call(
        kernel,
        out_shape=jax.ShapeDtypeStruct((B, S, D), out_dtype),
        grid_spec=pltpu.PrefetchScalarGridSpec(
            num_scalar_prefetch=0,
            grid=(B, S // tq, S // tkv),
            in_specs=[
                pl.BlockSpec((1, num_heads, tq, d_k),
                             lambda b, qi, ki: (b, 0, qi, 0)),            # Qp
                pl.BlockSpec((1, tkv, d_k), lambda b, qi, ki: (b, ki, 0)),  # Kp
                pl.BlockSpec((1, tkv, d_k), lambda b, qi, ki: (b, ki, 0)),  # Vp
                _const_block_spec((num_heads, d_k, D)),                   # WoT
                _const_block_spec((1, D)),                                # bias
            ],
            out_specs=pl.BlockSpec((1, tq, D), lambda b, qi, ki: (b, qi, 0)),
            scratch_shapes=[
                pltpu.VMEM((num_heads * tq, d_k), jnp.bfloat16),  # stacked Q
                pltpu.VMEM((num_heads * tq, 1), jnp.float32),     # running max
                pltpu.VMEM((num_heads * tq, 1), jnp.float32),     # running sum
                pltpu.VMEM((num_heads * tq, d_k), jnp.float32),   # accumulator
            ],
        ),
        compiler_params=pltpu.CompilerParams(
            dimension_semantics=("parallel", "parallel", "arbitrary"),
            vmem_limit_bytes=vmem_limit,
        ),
    )(qp, kp, vp, wot, bo2d)


def mqa_reference(q, k, v, wq, wk, wv, wo, bo, *, num_heads):
    """Pure-JAX f32 reference mirroring the PyTorch module exactly."""
    B, S, D = q.shape
    d_k = D // num_heads
    Q = q @ wq.T                                                  # (B, S, D)
    K = k @ wk.T                                                  # (B, S, d_k)
    V = v @ wv.T                                                  # (B, S, d_k)
    Q = Q.reshape(B, S, num_heads, d_k).transpose(0, 2, 1, 3)     # (B,H,S,d_k)
    scores = jnp.einsum('bhsd,btd->bhst', Q, K) / math.sqrt(d_k)
    w = jax.nn.softmax(scores, axis=-1)
    ctx = jnp.einsum('bhst,btd->bhsd', w, V)                      # (B,H,S,d_k)
    ctx = ctx.transpose(0, 2, 1, 3).reshape(B, S, D)
    return ctx @ wo.T + bo


def _run_case(key, *, B, S, D, H, rel_tol, abs_tol, label):
    d_k = D // H
    kq, kk, kv_, kwq, kwk, kwv, kwo, kbo = jax.random.split(key, 8)
    q = jax.random.normal(kq, (B, S, D), dtype=jnp.float32)
    k = jax.random.normal(kk, (B, S, D), dtype=jnp.float32)
    v = jax.random.normal(kv_, (B, S, D), dtype=jnp.float32)
    # PyTorch nn.Linear weight convention: (out_features, in_features).
    wq = jax.random.normal(kwq, (D, D), dtype=jnp.float32) * 0.1
    wk = jax.random.normal(kwk, (d_k, D), dtype=jnp.float32) * 0.1
    wv = jax.random.normal(kwv, (d_k, D), dtype=jnp.float32) * 0.1
    wo = jax.random.normal(kwo, (D, D), dtype=jnp.float32) * 0.1
    bo = jax.random.normal(kbo, (D,), dtype=jnp.float32) * 0.1

    out = multi_query_attention(q, k, v, wq, wk, wv, wo, bo, num_heads=H)
    out = jax.block_until_ready(out).astype(jnp.float32)
    assert out.shape == (B, S, D)

    ref = mqa_reference(q, k, v, wq, wk, wv, wo, bo, num_heads=H)
    # Tolerances account for bf16 MXU feeds (f32 accumulation / f32 softmax).
    rel_l2 = jnp.linalg.norm(out - ref) / (jnp.linalg.norm(ref) + 1e-12)
    max_abs = jnp.max(jnp.abs(out - ref))
    assert rel_l2 < rel_tol, f"{label}: relative L2 error {rel_l2}"
    assert max_abs < abs_tol, f"{label}: max abs error {max_abs}"


if __name__ == "__main__":
    root = jax.random.PRNGKey(0)
    k_small, k_tiled = jax.random.split(root)
    # Small single-tile case (module's natural small shapes).
    _run_case(k_small, B=2, S=8, D=32, H=4,
              rel_tol=1e-2, abs_tol=5e-2, label="small")
    # Multi-tile case: S//tq = 4 and S//tkv = 2 exercise the online-softmax
    # rescale/accumulate path and the (8,128) tiling constraints.
    _run_case(k_tiled, B=2, S=1024, D=128, H=4,
              rel_tol=2e-2, abs_tol=1.5e-1, label="tiled")
    print("KERNEL_OK")
</pallas_src>

<mosaic_0001>
module attributes {stable_mosaic.version = 11 : i64} {
  func.func @mqa_flash_kernel(%arg0: i32, %arg1: i32, %arg2: i32, %arg3: memref<1x4x8x8xbf16, #tpu.memory_space<vmem>>, %arg4: memref<1x8x8xbf16, #tpu.memory_space<vmem>>, %arg5: memref<1x8x8xbf16, #tpu.memory_space<vmem>>, %arg6: memref<4x8x32xbf16, #tpu.memory_space<vmem>>, %arg7: memref<1x32xf32, #tpu.memory_space<vmem>>, %arg8: memref<1x8x32xf32, #tpu.memory_space<vmem>>, %arg9: memref<32x8xbf16, #tpu.memory_space<vmem>>, %arg10: memref<32x1xf32, #tpu.memory_space<vmem>>, %arg11: memref<32x1xf32, #tpu.memory_space<vmem>>, %arg12: memref<32x8xf32, #tpu.memory_space<vmem>>) attributes {dimension_semantics = [#tpu.dimension_semantics<parallel>, #tpu.dimension_semantics<parallel>, #tpu.dimension_semantics<arbitrary>], iteration_bounds = array<i64: 2, 1, 1>, scalar_prefetch = 0 : i64, scratch_operands = 4 : i64, tpu.core_type = #tpu.core_type<tc>, window_params = [{transform_indices = @transform_0, window_bounds = array<i64: 1, 4, 8, 8>}, {transform_indices = @transform_1, window_bounds = array<i64: 1, 8, 8>}, {transform_indices = @transform_2, window_bounds = array<i64: 1, 8, 8>}, {pipeline_mode = #tpu.pipeline_mode<synchronous>, transform_indices = @transform_3, window_bounds = array<i64: 4, 8, 32>}, {pipeline_mode = #tpu.pipeline_mode<synchronous>, transform_indices = @transform_4, window_bounds = array<i64: 1, 32>}, {transform_indices = @transform_5, window_bounds = array<i64: 1, 8, 32>}]} {
    %c0_i32 = arith.constant 0 : i32
    %0 = arith.cmpi eq, %arg2, %c0_i32 : i32
    %1 = arith.extui %0 : i1 to i32
    %c0_i32_0 = arith.constant 0 : i32
    %2 = arith.cmpi ne, %1, %c0_i32_0 : i32
    scf.if %2 {
      %c0_25 = arith.constant 0 : index
      %c0_26 = arith.constant 0 : index
      %c0_27 = arith.constant 0 : index
      %c0_28 = arith.constant 0 : index
      %35 = vector.load %arg3[%c0_25, %c0_26, %c0_27, %c0_28] : memref<1x4x8x8xbf16, #tpu.memory_space<vmem>>, vector<1x1x8x8xbf16>
      %36 = vector.shape_cast %35 : vector<1x1x8x8xbf16> to vector<8x8xbf16>
      %c0_29 = arith.constant 0 : index
      %c0_30 = arith.constant 0 : index
      %37 = vector.load %arg9[%c0_29, %c0_30] : memref<32x8xbf16, #tpu.memory_space<vmem>>, vector<8x8xbf16>
      tpu.vector_store %arg9[%c0_29, %c0_30], %36 {strides = array<i32>} : memref<32x8xbf16, #tpu.memory_space<vmem>>, vector<8x8xbf16>,
      %c0_31 = arith.constant 0 : index
      %c1 = arith.constant 1 : index
      %c0_32 = arith.constant 0 : index
      %c0_33 = arith.constant 0 : index
      %38 = vector.load %arg3[%c0_31, %c1, %c0_32, %c0_33] : memref<1x4x8x8xbf16, #tpu.memory_space<vmem>>, vector<1x1x8x8xbf16>
      %39 = vector.shape_cast %38 : vector<1x1x8x8xbf16> to vector<8x8xbf16>
      %c8 = arith.constant 8 : index
      %c0_34 = arith.constant 0 : index
      %40 = vector.load %arg9[%c8, %c0_34] : memref<32x8xbf16, #tpu.memory_space<vmem>>, vector<8x8xbf16>
      tpu.vector_store %arg9[%c8, %c0_34], %39 {strides = array<i32>} : memref<32x8xbf16, #tpu.memory_space<vmem>>, vector<8x8xbf16>,
      %c0_35 = arith.constant 0 : index
      %c2 = arith.constant 2 : index
      %c0_36 = arith.constant 0 : index
      %c0_37 = arith.constant 0 : index
      %41 = vector.load %arg3[%c0_35, %c2, %c0_36, %c0_37] : memref<1x4x8x8xbf16, #tpu.memory_space<vmem>>, vector<1x1x8x8xbf16>
      %42 = vector.shape_cast %41 : vector<1x1x8x8xbf16> to vector<8x8xbf16>
      %c16 = arith.constant 16 : index
      %c0_38 = arith.constant 0 : index
      %43 = vector.load %arg9[%c16, %c0_38] : memref<32x8xbf16, #tpu.memory_space<vmem>>, vector<8x8xbf16>
      tpu.vector_store %arg9[%c16, %c0_38], %42 {strides = array<i32>} : memref<32x8xbf16, #tpu.memory_space<vmem>>, vector<8x8xbf16>,
      %c0_39 = arith.constant 0 : index
      %c3 = arith.constant 3 : index
      %c0_40 = arith.constant 0 : index
      %c0_41 = arith.constant 0 : index
      %44 = vector.load %arg3[%c0_39, %c3, %c0_40, %c0_41] : memref<1x4x8x8xbf16, #tpu.memory_space<vmem>>, vector<1x1x8x8xbf16>
      %45 = vector.shape_cast %44 : vector<1x1x8x8xbf16> to vector<8x8xbf16>
      %c24 = arith.constant 24 : index
      %c0_42 = arith.constant 0 : index
      %46 = vector.load %arg9[%c24, %c0_42] : memref<32x8xbf16, #tpu.memory_space<vmem>>, vector<8x8xbf16>
      tpu.vector_store %arg9[%c24, %c0_42], %45 {strides = array<i32>} : memref<32x8xbf16, #tpu.memory_space<vmem>>, vector<8x8xbf16>,
      %cst_43 = arith.constant 0xFF800000 : f32
      %47 = vector.broadcast %cst_43 : f32 to vector<32x1xf32>
      %c0_44 = arith.constant 0 : index
      %c0_45 = arith.constant 0 : index
      %48 = vector.load %arg10[%c0_44, %c0_45] : memref<32x1xf32, #tpu.memory_space<vmem>>, vector<32x1xf32>
      tpu.vector_store %arg10[%c0_44, %c0_45], %47 {strides = array<i32>} : memref<32x1xf32, #tpu.memory_space<vmem>>, vector<32x1xf32>,
      %cst_46 = arith.constant 0.000000e+00 : f32
      %49 = vector.broadcast %cst_46 : f32 to vector<32x1xf32>
      %c0_47 = arith.constant 0 : index
      %c0_48 = arith.constant 0 : index
      %50 = vector.load %arg11[%c0_47, %c0_48] : memref<32x1xf32, #tpu.memory_space<vmem>>, vector<32x1xf32>
      tpu.vector_store %arg11[%c0_47, %c0_48], %49 {strides = array<i32>} : memref<32x1xf32, #tpu.memory_space<vmem>>, vector<32x1xf32>,
      %cst_49 = arith.constant 0.000000e+00 : f32
      %51 = vector.broadcast %cst_49 : f32 to vector<32x8xf32>
      %c0_50 = arith.constant 0 : index
      %c0_51 = arith.constant 0 : index
      %52 = vector.load %arg12[%c0_50, %c0_51] : memref<32x8xf32, #tpu.memory_space<vmem>>, vector<32x8xf32>
      tpu.vector_store %arg12[%c0_50, %c0_51], %51 {strides = array<i32>} : memref<32x8xf32, #tpu.memory_space<vmem>>, vector<32x8xf32>,
    } else {
    }
    %c0 = arith.constant 0 : index
    %c0_1 = arith.constant 0 : index
    %c0_2 = arith.constant 0 : index
    %3 = vector.load %arg4[%c0, %c0_1, %c0_2] : memref<1x8x8xbf16, #tpu.memory_space<vmem>>, vector<1x8x8xbf16>
    %4 = vector.shape_cast %3 : vector<1x8x8xbf16> to vector<8x8xbf16>
    %c0_3 = arith.constant 0 : index
    %c0_4 = arith.constant 0 : index
    %c0_5 = arith.constant 0 : index
    %5 = vector.load %arg5[%c0_3, %c0_4, %c0_5] : memref<1x8x8xbf16, #tpu.memory_space<vmem>>, vector<1x8x8xbf16>
    %6 = vector.shape_cast %5 : vector<1x8x8xbf16> to vector<8x8xbf16>
    %c0_6 = arith.constant 0 : index
    %c0_7 = arith.constant 0 : index
    %7 = vector.load %arg9[%c0_6, %c0_7] : memref<32x8xbf16, #tpu.memory_space<vmem>>, vector<32x8xbf16>
    %cst = arith.constant dense<0.000000e+00> : vector<32x8xf32>
    %8 = tpu.matmul %7, %4, %cst {dimension_numbers = #tpu.dot_dimension_numbers<[1], [1], [0], [0], [0, 0, 1, 0], [], []>} : vector<32x8xbf16>, vector<8x8xbf16>, vector<32x8xf32> -> vector<32x8xf32>
    %c0_8 = arith.constant 0 : index
    %c0_9 = arith.constant 0 : index
    %9 = vector.load %arg10[%c0_8, %c0_9] : memref<32x1xf32, #tpu.memory_space<vmem>>, vector<32x1xf32>
    %cst_10 = arith.constant dense<0xFF800000> : vector<32xf32>
    %10 = vector.multi_reduction <maximumf>, %8, %cst_10 [1] : vector<32x8xf32> to vector<32xf32>
    %11 = vector.shape_cast %10 : vector<32xf32> to vector<32x1xf32>
    %12 = arith.maximumf %9, %11 : vector<32x1xf32>
    %13 = arith.subf %9, %12 : vector<32x1xf32>
    %14 = math.exp %13 : vector<32x1xf32>
    %15 = vector.broadcast %12 : vector<32x1xf32> to vector<32x8xf32>
    %16 = arith.subf %8, %15 : vector<32x8xf32>
    %17 = math.exp %16 : vector<32x8xf32>
    %c0_11 = arith.constant 0 : index
    %c0_12 = arith.constant 0 : index
    %18 = vector.load %arg11[%c0_11, %c0_12] : memref<32x1xf32, #tpu.memory_space<vmem>>, vector<32x1xf32>
    %19 = arith.mulf %14, %18 : vector<32x1xf32>
    %cst_13 = arith.constant dense<0.000000e+00> : vector<32xf32>
    %20 = vector.multi_reduction <add>, %17, %cst_13 [1] : vector<32x8xf32> to vector<32xf32>
    %21 = vector.shape_cast %20 : vector<32xf32> to vector<32x1xf32>
    %22 = arith.addf %19, %21 : vector<32x1xf32>
    %c0_14 = arith.constant 0 : index
    %c0_15 = arith.constant 0 : index
    %23 = vector.load %arg11[%c0_14, %c0_15] : memref<32x1xf32, #tpu.memory_space<vmem>>, vector<32x1xf32>
    tpu.vector_store %arg11[%c0_14, %c0_15], %22 {strides = array<i32>} : memref<32x1xf32, #tpu.memory_space<vmem>>, vector<32x1xf32>,
    %c0_16 = arith.constant 0 : index
    %c0_17 = arith.constant 0 : index
    %24 = vector.load %arg12[%c0_16, %c0_17] : memref<32x8xf32, #tpu.memory_space<vmem>>, vector<32x8xf32>
    %25 = vector.broadcast %14 : vector<32x1xf32> to vector<32x8xf32>
    %26 = arith.mulf %25, %24 : vector<32x8xf32>
    %27 = arith.truncf %17 : vector<32x8xf32> to vector<32x8xbf16>
    %cst_18 = arith.constant dense<0.000000e+00> : vector<32x8xf32>
    %28 = tpu.matmul %27, %6, %cst_18 {dimension_numbers = #tpu.dot_dimension_numbers<[1], [0], [0], [1], [0, 0, 1, 1], [], []>} : vector<32x8xbf16>, vector<8x8xbf16>, vector<32x8xf32> -> vector<32x8xf32>
    %29 = arith.addf %26, %28 : vector<32x8xf32>
    %c0_19 = arith.constant 0 : index
    %c0_20 = arith.constant 0 : index
    %30 = vector.load %arg12[%c0_19, %c0_20] : memref<32x8xf32, #tpu.memory_space<vmem>>, vector<32x8xf32>
    tpu.vector_store %arg12[%c0_19, %c0_20], %29 {strides = array<i32>} : memref<32x8xf32, #tpu.memory_space<vmem>>, vector<32x8xf32>,
    %c0_21 = arith.constant 0 : index
    %c0_22 = arith.constant 0 : index
    %31 = vector.load %arg10[%c0_21, %c0_22] : memref<32x1xf32, #tpu.memory_space<vmem>>, vector<32x1xf32>
    tpu.vector_store %arg10[%c0_21, %c0_22], %12 {strides = array<i32>} : memref<32x1xf32, #tpu.memory_space<vmem>>, vector<32x1xf32>,
    %c0_i32_23 = arith.constant 0 : i32
    %32 = arith.cmpi eq, %arg2, %c0_i32_23 : i32
    %33 = arith.extui %32 : i1 to i32
    %c0_i32_24 = arith.constant 0 : i32
    %34 = arith.cmpi ne, %33, %c0_i32_24 : i32
    scf.if %34 {
      %c0_25 = arith.constant 0 : index
      %c0_26 = arith.constant 0 : index
      %35 = vector.load %arg12[%c0_25, %c0_26] : memref<32x8xf32, #tpu.memory_space<vmem>>, vector<32x8xf32>
      %c0_27 = arith.constant 0 : index
      %c0_28 = arith.constant 0 : index
      %36 = vector.load %arg11[%c0_27, %c0_28] : memref<32x1xf32, #tpu.memory_space<vmem>>, vector<32x1xf32>
      %37 = tpu.reciprocal %36 {approx = true} : vector<32x1xf32> -> vector<32x1xf32>
      %38 = vector.broadcast %37 : vector<32x1xf32> to vector<32x8xf32>
      %39 = arith.mulf %35, %38 : vector<32x8xf32>
      %40 = vector.extract_strided_slice %39 {offsets = [0, 0], sizes = [8, 8], strides = [1, 1]} : vector<32x8xf32> to vector<8x8xf32>
      %41 = arith.truncf %40 : vector<8x8xf32> to vector<8x8xbf16>
      %c0_29 = arith.constant 0 : index
      %c0_30 = arith.constant 0 : index
      %c0_31 = arith.constant 0 : index
      %42 = vector.load %arg6[%c0_29, %c0_30, %c0_31] : memref<4x8x32xbf16, #tpu.memory_space<vmem>>, vector<1x8x32xbf16>
      %43 = vector.shape_cast %42 : vector<1x8x32xbf16> to vector<8x32xbf16>
      %cst_32 = arith.constant dense<0.000000e+00> : vector<8x32xf32>
      %44 = tpu.matmul %41, %43, %cst_32 {dimension_numbers = #tpu.dot_dimension_numbers<[1], [0], [0], [1], [0, 0, 1, 1], [], []>} : vector<8x8xbf16>, vector<8x32xbf16>, vector<8x32xf32> -> vector<8x32xf32>
      %45 = vector.extract_strided_slice %39 {offsets = [8, 0], sizes = [8, 8], strides = [1, 1]} : vector<32x8xf32> to vector<8x8xf32>
      %46 = arith.truncf %45 : vector<8x8xf32> to vector<8x8xbf16>
      %c1 = arith.constant 1 : index
      %c0_33 = arith.constant 0 : index
      %c0_34 = arith.constant 0 : index
      %47 = vector.load %arg6[%c1, %c0_33, %c0_34] : memref<4x8x32xbf16, #tpu.memory_space<vmem>>, vector<1x8x32xbf16>
      %48 = vector.shape_cast %47 : vector<1x8x32xbf16> to vector<8x32xbf16>
      %cst_35 = arith.constant dense<0.000000e+00> : vector<8x32xf32>
      %49 = tpu.matmul %46, %48, %cst_35 {dimension_numbers = #tpu.dot_dimension_numbers<[1], [0], [0], [1], [0, 0, 1, 1], [], []>} : vector<8x8xbf16>, vector<8x32xbf16>, vector<8x32xf32> -> vector<8x32xf32>
      %50 = arith.addf %44, %49 : vector<8x32xf32>
      %51 = vector.extract_strided_slice %39 {offsets = [16, 0], sizes = [8, 8], strides = [1, 1]} : vector<32x8xf32> to vector<8x8xf32>
      %52 = arith.truncf %51 : vector<8x8xf32> to vector<8x8xbf16>
      %c2 = arith.constant 2 : index
      %c0_36 = arith.constant 0 : index
      %c0_37 = arith.constant 0 : index
      %53 = vector.load %arg6[%c2, %c0_36, %c0_37] : memref<4x8x32xbf16, #tpu.memory_space<vmem>>, vector<1x8x32xbf16>
      %54 = vector.shape_cast %53 : vector<1x8x32xbf16> to vector<8x32xbf16>
      %cst_38 = arith.constant dense<0.000000e+00> : vector<8x32xf32>
      %55 = tpu.matmul %52, %54, %cst_38 {dimension_numbers = #tpu.dot_dimension_numbers<[1], [0], [0], [1], [0, 0, 1, 1], [], []>} : vector<8x8xbf16>, vector<8x32xbf16>, vector<8x32xf32> -> vector<8x32xf32>
      %56 = arith.addf %50, %55 : vector<8x32xf32>
      %57 = vector.extract_strided_slice %39 {offsets = [24, 0], sizes = [8, 8], strides = [1, 1]} : vector<32x8xf32> to vector<8x8xf32>
      %58 = arith.truncf %57 : vector<8x8xf32> to vector<8x8xbf16>
      %c3 = arith.constant 3 : index
      %c0_39 = arith.constant 0 : index
      %c0_40 = arith.constant 0 : index
      %59 = vector.load %arg6[%c3, %c0_39, %c0_40] : memref<4x8x32xbf16, #tpu.memory_space<vmem>>, vector<1x8x32xbf16>
      %60 = vector.shape_cast %59 : vector<1x8x32xbf16> to vector<8x32xbf16>
      %cst_41 = arith.constant dense<0.000000e+00> : vector<8x32xf32>
      %61 = tpu.matmul %58, %60, %cst_41 {dimension_numbers = #tpu.dot_dimension_numbers<[1], [0], [0], [1], [0, 0, 1, 1], [], []>} : vector<8x8xbf16>, vector<8x32xbf16>, vector<8x32xf32> -> vector<8x32xf32>
      %62 = arith.addf %56, %61 : vector<8x32xf32>
      %c0_42 = arith.constant 0 : index
      %c0_43 = arith.constant 0 : index
      %63 = vector.load %arg7[%c0_42, %c0_43] : memref<1x32xf32, #tpu.memory_space<vmem>>, vector<1x32xf32>
      %64 = vector.broadcast %63 : vector<1x32xf32> to vector<8x32xf32>
      %65 = arith.addf %62, %64 : vector<8x32xf32>
      %c0_44 = arith.constant 0 : index
      %c0_45 = arith.constant 0 : index
      %c0_46 = arith.constant 0 : index
      %66 = vector.load %arg8[%c0_44, %c0_45, %c0_46] : memref<1x8x32xf32, #tpu.memory_space<vmem>>, vector<1x8x32xf32>
      %67 = vector.shape_cast %66 : vector<1x8x32xf32> to vector<8x32xf32>
      %68 = vector.shape_cast %65 : vector<8x32xf32> to vector<1x8x32xf32>
      tpu.vector_store %arg8[%c0_44, %c0_45, %c0_46], %68 {strides = array<i32>} : memref<1x8x32xf32, #tpu.memory_space<vmem>>, vector<1x8x32xf32>,
    } else {
    }
    return
  }
  func.func @transform_0(%arg0: i32, %arg1: i32, %arg2: i32) -> (i32, i32, i32, i32) {
    %c0_i32 = arith.constant 0 : i32
    %c0_i32_0 = arith.constant 0 : i32
    %c0_i32_1 = arith.constant 0 : i32
    return %arg0, %c0_i32, %arg1, %c0_i32_0 : i32, i32, i32, i32
  }
  func.func @transform_1(%arg0: i32, %arg1: i32, %arg2: i32) -> (i32, i32, i32) {
    %c0_i32 = arith.constant 0 : i32
    %c0_i32_0 = arith.constant 0 : i32
    return %arg0, %arg2, %c0_i32 : i32, i32, i32
  }
  func.func @transform_2(%arg0: i32, %arg1: i32, %arg2: i32) -> (i32, i32, i32) {
    %c0_i32 = arith.constant 0 : i32
    %c0_i32_0 = arith.constant 0 : i32
    return %arg0, %arg2, %c0_i32 : i32, i32, i32
  }
  func.func @transform_3(%arg0: i32, %arg1: i32, %arg2: i32) -> (i32, i32, i32) {
    %c0_i32 = arith.constant 0 : i32
    %c0_i32_0 = arith.constant 0 : i32
    %c0_i32_1 = arith.constant 0 : i32
    %c0_i32_2 = arith.constant 0 : i32
    return %c0_i32, %c0_i32_0, %c0_i32_1 : i32, i32, i32
  }
  func.func @transform_4(%arg0: i32, %arg1: i32, %arg2: i32) -> (i32, i32) {
    %c0_i32 = arith.constant 0 : i32
    %c0_i32_0 = arith.constant 0 : i32
    %c0_i32_1 = arith.constant 0 : i32
    return %c0_i32, %c0_i32_0 : i32, i32
  }
  func.func @transform_5(%arg0: i32, %arg1: i32, %arg2: i32) -> (i32, i32, i32) {
    %c0_i32 = arith.constant 0 : i32
    %c0_i32_0 = arith.constant 0 : i32
    return %arg0, %arg1, %c0_i32 : i32, i32, i32
  }
}

</mosaic_0001>

<llo_original>
// kernel: tpu_custom_call.1
$region0: #{tpu_custom_call.1}
  #allocation0 [shape = 'u32[]', space=smem, size = 0x4, offset = 0x4, fixed_abs, tag = 'smem constant byte address 0x4 - core index']
  #allocation1 [shape = 'u32[144,128]{1,0:T(1,128)}', space=vmem, size = 0x12000, scoped, tag = 'internal scratch']
  #allocation2 [shape = 'bf16[32,8]{1,0:T(16,128)(2,1)}', space=vmem, size = 0x2000, scoped, tag = 'scratch operand']
  #allocation3 [shape = 'f32[32,1]{1,0:T(8,128)}', space=vmem, size = 0x4000, scoped, tag = 'scratch operand']
  #allocation4 [shape = 'f32[32,1]{1,0:T(8,128)}', space=vmem, size = 0x4000, scoped, tag = 'scratch operand']
  #allocation5 [shape = 'f32[32,8]{1,0:T(8,128)}', space=vmem, size = 0x4000, scoped, tag = 'scratch operand']
  %s0 = inlined_call_operand.hbm [shape: bf16[2,4,8,8], index: 0, kind: input, shape index: {}]
  %s1 = inlined_call_operand.hbm [shape: bf16[2,8,8], index: 1, kind: input, shape index: {}]
  %s2 = inlined_call_operand.hbm [shape: bf16[2,8,8], index: 2, kind: input, shape index: {}]
  %s3 = inlined_call_operand.hbm [shape: bf16[4,8,32], index: 3, kind: input, shape index: {}]
  %s4 = inlined_call_operand.vmem [shape: f32[1,32], index: 4, kind: input, shape index: {}]
  %s5 = inlined_call_operand.hbm [shape: f32[2,8,32], index: 5, kind: output, shape index: {}]
  %s6 = sld [smem:[#allocation0]]
  $region77: #{tpu_custom_call.1} parent=0
    _
  %s8 = ssub.s32 1, %s6
  %s9 = scalar_select 0, %s8, %s6
  $region1: #{tpu_custom_call.1} parent=0
    #allocation6 [shape = 'u8[16384]{0}', space=vmem, size = 0x4000, scoped, tag = 'input window, operand 0']
    #allocation7 [shape = 's32[2]{0}', space=sflag, size = 0x8, scoped, tag = 'scoped memory for tpu_custom_call.1']
    #allocation8 [shape = 's32[2]{0}', space=sflag, size = 0x8, scoped, tag = 'scoped memory for tpu_custom_call.1']
    #allocation9 [shape = 'u8[4096]{0}', space=vmem, size = 0x1000, scoped, tag = 'input window, operand 1']
    #allocation10 [shape = 's32[2]{0}', space=sflag, size = 0x8, scoped, tag = 'scoped memory for tpu_custom_call.1']
    #allocation11 [shape = 'u8[4096]{0}', space=vmem, size = 0x1000, scoped, tag = 'input window, operand 2']
    #allocation12 [shape = 'u8[8192]{0}', space=vmem, size = 0x2000, scoped, tag = 'input window, operand 3, single buffered']
    #allocation13 [shape = 's32[1]{0}', space=sflag, size = 0x4, scoped, tag = 'scoped memory for tpu_custom_call.1']
    #allocation14 [shape = 'u8[8192]{0}', space=vmem, size = 0x2000, scoped, tag = 'output window, operand 0']
    %10 = vsyncpa [#allocation7], 0
    %s11 = scalar_lea.sflag [#allocation7], 1
    %12 = vsyncpa %s11, 0
    %13 = vsyncpa [#allocation10], 0
    %s14 = scalar_lea.sflag [#allocation10], 1
    %15 = vsyncpa %s14, 0
    %16 = vsyncpa [#allocation13], 0
    %17 = vsyncpa [#allocation8], 0
    %s18 = scalar_lea.sflag [#allocation8], 1
    %19 = vsyncpa %s18, 0
    loop: start=0, step=1, limit=4
    $region2: #{tpu_custom_call.1} parent=1 // loop_pre_header
      _
    $region3: #{tpu_custom_call.1} parent=1 // loop_header
      %s21 = sphi 0, %s25
      %p22 = scmp.ge.s32.totalorder %s21, 4
      %s28 = sphi 0, %s47
      %s29 = sphi 0, %s43
      %s30 = sphi 0, %s39
      %s31 = sphi 0, %s28
      %s32 = sphi 0, %s29
      %s33 = sphi 0, %s30
      %s34 = sphi 0, %s31
      %s35 = sphi 0, %s32
      %s36 = sphi 0, %s33
      %s52 = sphi 0, %s54
      %s55 = sphi 0, %s52
      %s56 = sphi 0, %s55
      %s72 = sphi 0, %s56
      %s80 = sphi 0, %s82
      %s83 = sphi 0, %s80
      %s84 = sphi 0, %s83
      %s100 = sphi 0, %s84
      %s108 = sphi 0, %s110
      %s111 = sphi 0, %s108
      %s112 = sphi 0, %s111
      %s128 = sphi 0, %s112
      %s132 = sphi 0, %s132
      %s134 = sphi 0, %s132
      %s135 = sphi 0, %s134
      %s149 = sphi 0, %s135
      %s153 = sphi 0, %s153
      %s155 = sphi 0, %s153
      %s156 = sphi 0, %s155
      %s170 = sphi 0, %s156
      %s178 = sphi 0, %s180
      %s181 = sphi 0, %s178
      %s182 = sphi 0, %s181
      %s198 = sphi 0, %s182
    $region4: #{tpu_custom_call.1} parent=1 // loop_header_branch
      %24 = sbr.rel (%p22) target = $region8
    $region5: #{tpu_custom_call.1} parent=1 // loop_body
      %s26 = ssub.s32 %s21, 1
      %s27 = ssub.s32 %s21, 2
      %s37 = sadd.s32 1, %s30
      %p38 = scmp.ge.s32.totalorder %s37, 1
      %s39 = scalar_select %p38, 0, %s37
      %s40 = sadd.s32 1, %s29
      %s41 = scalar_select %p38, %s40, %s29
      %p42 = scmp.ge.s32.totalorder %s41, 1
      %s43 = scalar_select %p42, 0, %s41
      %s44 = sadd.s32 1, %s28
      %s45 = scalar_select %p42, %s44, %s28
      %p46 = scmp.ge.s32.totalorder %s45, 2
      %s47 = scalar_select %p46, 0, %s45
      %s48 = ssub.s32 %s28, %s47
      %s49 = ssub.s32 %s29, %s43
      %s50 = sor.u32 %s48, %s49
      %p51 = scmp.eq.s32.totalorder %s50, 0
      %s53 = sadd.s32 %s52, 1
      %s54 = scalar_select %p51, %s52, %s53
      %p57 = pneg %p51
      %p58 = scmp.eq.s32.totalorder %s21, 1
      %p59 = por %p57, %p58
      %p60 = scmp.ne.s32.totalorder %s52, %s55
      %p61 = scmp.eq.s32.totalorder %s21, 0
      %p62 = por %p60, %p61
      %p63 = scmp.ne.s32.totalorder %s52, %s55
      %p64 = scmp.eq.s32.totalorder %s26, 1
      %p65 = por %p63, %p64
      %p66 = scmp.ne.s32.totalorder %s55, %s56
      %p67 = scmp.eq.s32.totalorder %s26, 0
      %p68 = por %p66, %p67
      %p69 = scmp.ne.s32.totalorder %s55, %s56
      %p70 = scmp.eq.s32.totalorder %s27, 1
      %p71 = por %p69, %p70
      %p73 = scmp.ne.s32.totalorder %s56, %s72
      %p74 = scmp.eq.s32.totalorder %s27, 0
      %p75 = por %p73, %p74
      %s76 = ssub.s32 %s28, %s47
      %s77 = ssub.s32 %s30, %s39
      %s78 = sor.u32 %s76, %s77
      %p79 = scmp.eq.s32.totalorder %s78, 0
      %s81 = sadd.s32 %s80, 1
      %s82 = scalar_select %p79, %s80, %s81
      %p85 = pneg %p79
      %p86 = scmp.eq.s32.totalorder %s21, 1
      %p87 = por %p85, %p86
      %p88 = scmp.ne.s32.totalorder %s80, %s83
      %p89 = scmp.eq.s32.totalorder %s21, 0
      %p90 = por %p88, %p89
      %p91 = scmp.ne.s32.totalorder %s80, %s83
      %p92 = scmp.eq.s32.totalorder %s26, 1
      %p93 = por %p91, %p92
      %p94 = scmp.ne.s32.totalorder %s83, %s84
      %p95 = scmp.eq.s32.totalorder %s26, 0
      %p96 = por %p94, %p95
      %p97 = scmp.ne.s32.totalorder %s83, %s84
      %p98 = scmp.eq.s32.totalorder %s27, 1
      %p99 = por %p97, %p98
      %p101 = scmp.ne.s32.totalorder %s84, %s100
      %p102 = scmp.eq.s32.totalorder %s27, 0
      %p103 = por %p101, %p102
      %s104 = ssub.s32 %s28, %s47
      %s105 = ssub.s32 %s30, %s39
      %s106 = sor.u32 %s104, %s105
      %p107 = scmp.eq.s32.totalorder %s106, 0
      %s109 = sadd.s32 %s108, 1
      %s110 = scalar_select %p107, %s108, %s109
      %p113 = pneg %p107
      %p114 = scmp.eq.s32.totalorder %s21, 1
      %p115 = por %p113, %p114
      %p116 = scmp.ne.s32.totalorder %s108, %s111
      %p117 = scmp.eq.s32.totalorder %s21, 0
      %p118 = por %p116, %p117
      %p119 = scmp.ne.s32.totalorder %s108, %s111
      %p120 = scmp.eq.s32.totalorder %s26, 1
      %p121 = por %p119, %p120
      %p122 = scmp.ne.s32.totalorder %s111, %s112
      %p123 = scmp.eq.s32.totalorder %s26, 0
      %p124 = por %p122, %p123
      %p125 = scmp.ne.s32.totalorder %s111, %s112
      %p126 = scmp.eq.s32.totalorder %s27, 1
      %p127 = por %p125, %p126
      %p129 = scmp.ne.s32.totalorder %s112, %s128
      %p130 = scmp.eq.s32.totalorder %s27, 0
      %p131 = por %p129, %p130
      %s133 = sadd.s32 %s132, 1
      %p136 = scmp.eq.s32.totalorder %s21, 1
      %p137 = scmp.ne.s32.totalorder %s132, %s134
      %p138 = scmp.eq.s32.totalorder %s21, 0
      %p139 = por %p137, %p138
      %p140 = scmp.ne.s32.totalorder %s132, %s134
      %p141 = scmp.eq.s32.totalorder %s26, 1
      %p142 = por %p140, %p141
      %p143 = scmp.ne.s32.totalorder %s134, %s135
      %p144 = scmp.eq.s32.totalorder %s26, 0
      %p145 = por %p143, %p144
      %p146 = scmp.ne.s32.totalorder %s134, %s135
      %p147 = scmp.eq.s32.totalorder %s27, 1
      %p148 = por %p146, %p147
      %p150 = scmp.ne.s32.totalorder %s135, %s149
      %p151 = scmp.eq.s32.totalorder %s27, 0
      %p152 = por %p150, %p151
      %s154 = sadd.s32 %s153, 1
      %p157 = scmp.eq.s32.totalorder %s21, 1
      %p158 = scmp.ne.s32.totalorder %s153, %s155
      %p159 = scmp.eq.s32.totalorder %s21, 0
      %p160 = por %p158, %p159
      %p161 = scmp.ne.s32.totalorder %s153, %s155
      %p162 = scmp.eq.s32.totalorder %s26, 1
      %p163 = por %p161, %p162
      %p164 = scmp.ne.s32.totalorder %s155, %s156
      %p165 = scmp.eq.s32.totalorder %s26, 0
      %p166 = por %p164, %p165
      %p167 = scmp.ne.s32.totalorder %s155, %s156
      %p168 = scmp.eq.s32.totalorder %s27, 1
      %p169 = por %p167, %p168
      %p171 = scmp.ne.s32.totalorder %s156, %s170
      %p172 = scmp.eq.s32.totalorder %s27, 0
      %p173 = por %p171, %p172
      %s174 = ssub.s32 %s28, %s47
      %s175 = ssub.s32 %s29, %s43
      %s176 = sor.u32 %s174, %s175
      %p177 = scmp.eq.s32.totalorder %s176, 0
      %s179 = sadd.s32 %s178, 1
      %s180 = scalar_select %p177, %s178, %s179
      %p183 = pneg %p177
      %p184 = scmp.eq.s32.totalorder %s21, 1
      %p185 = por %p183, %p184
      %p186 = scmp.ne.s32.totalorder %s178, %s181
      %p187 = scmp.eq.s32.totalorder %s21, 0
      %p188 = por %p186, %p187
      %p189 = scmp.ne.s32.totalorder %s178, %s181
      %p190 = scmp.eq.s32.totalorder %s26, 1
      %p191 = por %p189, %p190
      %p192 = scmp.ne.s32.totalorder %s181, %s182
      %p193 = scmp.eq.s32.totalorder %s26, 0
      %p194 = por %p192, %p193
      %p195 = scmp.ne.s32.totalorder %s181, %s182
      %p196 = scmp.eq.s32.totalorder %s27, 1
      %p197 = por %p195, %p196
      %p199 = scmp.ne.s32.totalorder %s182, %s198
      %p200 = scmp.eq.s32.totalorder %s27, 0
      %p201 = por %p199, %p200
      %p202 = scmp.le.s32.totalorder 1, %s21
      %p203 = scmp.lt.s32.totalorder %s21, 3
      %p204 = pnand %p202, %p203
      %p205 = pneg %p204
      // Predicated region
      $region9: #{tpu_custom_call.1} parent=5 // pred_check
        _
      $region10: #{tpu_custom_call.1} parent=5 // pred_check_branch
        %207 = sbr.rel (%p204) target = $region12
      $region11: #{tpu_custom_call.1} parent=5 // pred_region
        %s208 = ssub.s32 %s21, 1
        // Predicated region
        $region13: #{tpu_custom_call.1} parent=11 // pred_check
          %p209 = pneg %p145
        $region14: #{tpu_custom_call.1} parent=11 // pred_check_branch
          %211 = sbr.rel (%p209) target = $region16
        $region15: #{tpu_custom_call.1} parent=11 // pred_region
          %s213 = ssub.s32 256, 256
          %214 = vsyncadd [#allocation13], %s213
          %s215 = sshll.u32 [#allocation12], 4
          %s216 = int_to_ptr.vmem [resolvable:$true] %s215
          %221 = dma.hbm_to_vmem [thread:$0]  %s3, 256, %s216, [#allocation13], 64, 64, 4
        $region16: #{tpu_custom_call.1} parent=11 // pred_fallthru
          _
        // Predicated region
        $region17: #{tpu_custom_call.1} parent=11 // pred_check
          %p222 = pneg %p166
        $region18: #{tpu_custom_call.1} parent=11 // pred_check_branch
          %224 = sbr.rel (%p222) target = $region20
        $region19: #{tpu_custom_call.1} parent=11 // pred_region
          _
        $region20: #{tpu_custom_call.1} parent=11 // pred_fallthru
          _
      $region12: #{tpu_custom_call.1} parent=5 // pred_fallthru
        _
      %p225 = scmp.lt.s32.totalorder %s21, 2
      // Predicated region
      $region21: #{tpu_custom_call.1} parent=5 // pred_check
        %p226 = pneg %p225
      $region22: #{tpu_custom_call.1} parent=5 // pred_check_branch
        %228 = sbr.rel (%p226) target = $region24
      $region23: #{tpu_custom_call.1} parent=5 // pred_region
        // Predicated region
        $region25: #{tpu_custom_call.1} parent=23 // pred_check
          %p229 = pneg %p62
        $region26: #{tpu_custom_call.1} parent=23 // pred_check_branch
          %231 = sbr.rel (%p229) target = $region28
        $region27: #{tpu_custom_call.1} parent=23 // pred_region
          %s232 = sand.u32 %s52, 1
          %s233 = scalar_lea.sflag [#allocation7], %s232
          %s234 = sand.u32 %s52, 1
          %s235 = smul.addr %s234, 16
          %s236 = scalar_lea.vmem [#allocation6], %s235
          %s238 = ssub.s32 256, 256
          %239 = vsyncadd %s233, %s238
          %s240 = smul.addr %s28, 4
          %s241 = sadd.s32 %s29, %s240
          %s242 = smul.addr %s241, 64
          %s243 = scalar_lea.hbm %s0, %s242
          %s244 = sshll.u32 %s236, 4
          %s245 = int_to_ptr.vmem [resolvable:$true] %s244
          %250 = dma.hbm_to_vmem [thread:$0]  %s243, 256, %s245, %s233, 64, 64, 4
        $region28: #{tpu_custom_call.1} parent=23 // pred_fallthru
          _
        // Predicated region
        $region29: #{tpu_custom_call.1} parent=23 // pred_check
          %p251 = pneg %p90
        $region30: #{tpu_custom_call.1} parent=23 // pred_check_branch
          %253 = sbr.rel (%p251) target = $region32
        $region31: #{tpu_custom_call.1} parent=23 // pred_region
          %s254 = sand.u32 %s21, 1
          %s255 = scalar_lea.sflag [#allocation10], %s254
          %s256 = sand.u32 %s80, 1
          %s257 = smul.addr %s256, 4
          %s258 = scalar_lea.vmem [#allocation9], %s257
          %s260 = ssub.s32 64, 64
          %261 = vsyncadd %s255, %s260
          %s262 = sadd.s32 %s30, %s28
          %s263 = smul.addr %s262, 64
          %s264 = scalar_lea.hbm %s1, %s263
          %s266 = sshll.u32 %s258, 4
          %s267 = int_to_ptr.vmem [resolvable:$true] %s266
          %269 = dma.hbm_to_vmem [thread:$0]  %s264, 64, %s267, %s255
        $region32: #{tpu_custom_call.1} parent=23 // pred_fallthru
          _
        // Predicated region
        $region33: #{tpu_custom_call.1} parent=23 // pred_check
          %p270 = pneg %p118
        $region34: #{tpu_custom_call.1} parent=23 // pred_check_branch
          %272 = sbr.rel (%p270) target = $region36
        $region35: #{tpu_custom_call.1} parent=23 // pred_region
          %s273 = sand.u32 %s21, 1
          %s274 = scalar_lea.sflag [#allocation10], %s273
          %s275 = sand.u32 %s108, 1
          %s276 = smul.addr %s275, 4
          %s277 = scalar_lea.vmem [#allocation11], %s276
          %s279 = ssub.s32 64, 64
          %280 = vsyncadd %s274, %s279
          %s281 = sadd.s32 %s30, %s28
          %s282 = smul.addr %s281, 64
          %s283 = scalar_lea.hbm %s2, %s282
          %s285 = sshll.u32 %s277, 4
          %s286 = int_to_ptr.vmem [resolvable:$true] %s285
          %288 = dma.hbm_to_vmem [thread:$0]  %s283, 64, %s286, %s274
        $region36: #{tpu_custom_call.1} parent=23 // pred_fallthru
          _
      $region24: #{tpu_custom_call.1} parent=5 // pred_fallthru
        _
      %p289 = scmp.le.s32.totalorder 1, %s21
      %p290 = scmp.lt.s32.totalorder %s21, 3
      %p291 = pnand %p289, %p290
      %p292 = pneg %p291
      // Predicated region
      $region37: #{tpu_custom_call.1} parent=5 // pred_check
        _
      $region38: #{tpu_custom_call.1} parent=5 // pred_check_branch
        %294 = sbr.rel (%p291) target = $region40
      $region39: #{tpu_custom_call.1} parent=5 // pred_region
        %s295 = ssub.s32 %s21, 1
        %s296 = sand.u32 %s55, 1
        %s297 = scalar_lea.sflag [#allocation7], %s296
        %s298 = sand.u32 %s55, 1
        %s299 = smul.addr %s298, 16
        %s300 = scalar_lea.vmem [#allocation6], %s299
        // Predicated region
        $region41: #{tpu_custom_call.1} parent=39 // pred_check
          %p301 = pneg %p68
        $region42: #{tpu_custom_call.1} parent=39 // pred_check_branch
          %303 = sbr.rel (%p301) target = $region44
        $region43: #{tpu_custom_call.1} parent=39 // pred_region
          %304 = dma.done %s297, 256
        $region44: #{tpu_custom_call.1} parent=39 // pred_fallthru
          _
        %s305 = sand.u32 %s26, 1
        %s306 = scalar_lea.sflag [#allocation10], %s305
        %s307 = sand.u32 %s83, 1
        %s308 = smul.addr %s307, 4
        %s309 = scalar_lea.vmem [#allocation9], %s308
        // Predicated region
        $region45: #{tpu_custom_call.1} parent=39 // pred_check
          %p310 = pneg %p96
        $region46: #{tpu_custom_call.1} parent=39 // pred_check_branch
          %312 = sbr.rel (%p310) target = $region48
        $region47: #{tpu_custom_call.1} parent=39 // pred_region
          %313 = dma.done %s306, 64
        $region48: #{tpu_custom_call.1} parent=39 // pred_fallthru
          _
        %s314 = sand.u32 %s26, 1
        %s315 = scalar_lea.sflag [#allocation10], %s314
        %s316 = sand.u32 %s111, 1
        %s317 = smul.addr %s316, 4
        %s318 = scalar_lea.vmem [#allocation11], %s317
        // Predicated region
        $region49: #{tpu_custom_call.1} parent=39 // pred_check
          %p319 = pneg %p124
        $region50: #{tpu_custom_call.1} parent=39 // pred_check_branch
          %321 = sbr.rel (%p319) target = $region52
        $region51: #{tpu_custom_call.1} parent=39 // pred_region
          %322 = dma.done %s315, 64
        $region52: #{tpu_custom_call.1} parent=39 // pred_fallthru
          _
        // Predicated region
        $region53: #{tpu_custom_call.1} parent=39 // pred_check
          %p323 = pneg %p145
        $region54: #{tpu_custom_call.1} parent=39 // pred_check_branch
          %325 = sbr.rel (%p323) target = $region56
        $region55: #{tpu_custom_call.1} parent=39 // pred_region
          %326 = dma.done [#allocation13], 256
        $region56: #{tpu_custom_call.1} parent=39 // pred_fallthru
          _
        %s327 = sand.u32 %s55, 1
        %s328 = scalar_lea.sflag [#allocation7], %s327
        %s329 = sand.u32 %s55, 1
        %s330 = smul.addr %s329, 16
        %s331 = scalar_lea.vmem [#allocation6], %s330
        %p332 = pneg %p68
        %p333 = pneg %p65
        %s334 = sand.u32 %s26, 1
        %s335 = scalar_lea.sflag [#allocation10], %s334
        %s336 = sand.u32 %s83, 1
        %s337 = smul.addr %s336, 4
        %s338 = scalar_lea.vmem [#allocation9], %s337
        %p339 = pneg %p96
        %p340 = pneg %p93
        %s341 = sand.u32 %s26, 1
        %s342 = scalar_lea.sflag [#allocation10], %s341
        %s343 = sand.u32 %s111, 1
        %s344 = smul.addr %s343, 4
        %s345 = scalar_lea.vmem [#allocation11], %s344
        %p346 = pneg %p124
        %p347 = pneg %p121
        %p348 = pneg %p145
        %p349 = pneg %p142
        %p350 = pneg %p166
        %p351 = pneg %p163
        %p352 = pneg %p194
        %p353 = pneg %p191
        %s354 = sand.u32 %s181, 1
        %s355 = scalar_lea.sflag [#allocation8], %s354
        %s356 = sand.u32 %s181, 1
        %s357 = smul.addr %s356, 8
        %s358 = scalar_lea.vmem [#allocation14], %s357
        %p360 = scmp.eq.s32.totalorder %s33, 0
        // Predicated region
        $region57: #{tpu_custom_call.1} parent=39 // pred_check
          %p361 = pneg %p360
        $region58: #{tpu_custom_call.1} parent=39 // pred_check_branch
          %363 = sbr.rel (%p361) target = $region60
        $region59: #{tpu_custom_call.1} parent=39 // pred_region
          %v364 = vld [vmem:[%s300] sm:$0xf]
          %vm365 = vcmask 60416
          %366 = vst.msk [vmem:[#allocation2] sm:$0xf] %vm365, %v364
          %s367 = scalar_lea.vmem %s300, 4 [#allocation6]
          %v368 = vld [vmem:[%s367] sm:$0xf]
          %v370 = vunpack.c.l.b16 %v368
          %v371 = vpack.c.b16 %v370, %v370
          %vm373 = vcmask 64516
          %374 = vst.msk [vmem:[#allocation2] sm:$0xf0] %vm373, %v371
          %s375 = scalar_lea.vmem %s300, 8 [#allocation6]
          %v376 = vld [vmem:[%s375] sm:$0xf]
          %377 = vst.msk [vmem:[#allocation2 + $0x8] sm:$0xf] %vm365, %v376
          %s378 = scalar_lea.vmem %s300, 12 [#allocation6]
          %v379 = vld [vmem:[%s378] sm:$0xf]
          %v381 = vunpack.c.l.b16 %v379
          %v382 = vpack.c.b16 %v381, %v381
          %384 = vst.msk [vmem:[#allocation2 + $0x8] sm:$0xf0] %vm373, %v382
          %vm385 = vcmask 7168
          %386 = vst.msk [vmem:[#allocation3] sm:$0xff] %vm385, -inf
          %387 = vst.msk [vmem:[#allocation3 + $0x8] sm:$0xff] %vm385, -inf
          %388 = vst.msk [vmem:[#allocation3 + $0x10] sm:$0xff] %vm385, -inf
          %389 = vst.msk [vmem:[#allocation3 + $0x18] sm:$0xff] %vm385, -inf
          %390 = vst.msk [vmem:[#allocation4] sm:$0xff] %vm385, 0.0
          %391 = vst.msk [vmem:[#allocation4 + $0x8] sm:$0xff] %vm385, 0.0
          %392 = vst.msk [vmem:[#allocation4 + $0x10] sm:$0xff] %vm385, 0.0
          %393 = vst.msk [vmem:[#allocation4 + $0x18] sm:$0xff] %vm385, 0.0
          %vm394 = vcmask 64512
          %395 = vst.msk [vmem:[#allocation5] sm:$0xff] %vm394, 0.0
          %396 = vst.msk [vmem:[#allocation5 + $0x8] sm:$0xff] %vm394, 0.0
          %397 = vst.msk [vmem:[#allocation5 + $0x10] sm:$0xff] %vm394, 0.0
          %398 = vst.msk [vmem:[#allocation5 + $0x18] sm:$0xff] %vm394, 0.0
        $region60: #{tpu_custom_call.1} parent=39 // pred_fallthru
          _
        %v399 = vld [vmem:[%s309] sm:$0xf]
        %v400 = vld [vmem:[%s318] sm:$0xf]
        %v401 = vld [vmem:[#allocation2] sm:$0xff]
        %v402 = vld [vmem:[#allocation2 + $0x8] sm:$0xff]
        %vm403 = vcmask 64512
        %v405 = vsel %vm403, %v401, 0
        %v408 = vsel %vm403, %v402, 0
        %v411 = vsel %vm403, %v399, 0
        %413 = vmatprep.subr.bf16.mxu0 0
        %414 = vmatpush1.bf16.xpose.msra.mxu0 %v411
        %415 = vmatprep.subr.bf16.mxu0 0
        %416 = vmatpush1.bf16.xpose.msra.mxu0 0
        %417 = vmatprep.subr.bf16.mxu0 0
        %418 = vmatpush1.bf16.xpose.msra.mxu0 0
        %419 = vmatprep.subr.bf16.mxu0 0
        %420 = vmatpush1.bf16.xpose.msra.mxu0 0
        %421 = vmatprep.subr.bf16.mxu0 0
        %422 = vmatpush1.bf16.xpose.msra.mxu0 0
        %423 = vmatprep.subr.bf16.mxu0 0
        %424 = vmatpush1.bf16.xpose.msra.mxu0 0
        %425 = vmatprep.subr.bf16.mxu0 0
        %426 = vmatpush1.bf16.xpose.msra.mxu0 0
        %427 = vmatprep.subr.bf16.mxu0 0
        %428 = vmatpush1.bf16.xpose.msra.mxu0 0
        %429 = vmatprep.subr.bf16.mxu0 0
        %430 = vmatpush1.bf16.xpose.msra.mxu0 0
        %431 = vmatprep.subr.bf16.mxu0 0
        %432 = vmatpush1.bf16.xpose.msra.mxu0 0
        %433 = vmatprep.subr.bf16.mxu0 0
        %434 = vmatpush1.bf16.xpose.msra.mxu0 0
        %435 = vmatprep.subr.bf16.mxu0 0
        %436 = vmatpush1.bf16.xpose.msra.mxu0 0
        %437 = vmatprep.subr.bf16.mxu0 0
        %438 = vmatpush1.bf16.xpose.msra.mxu0 0
        %439 = vmatprep.subr.bf16.mxu0 0
        %440 = vmatpush1.bf16.xpose.msra.mxu0 0
        %441 = vmatprep.subr.bf16.mxu0 0
        %442 = vmatpush1.bf16.xpose.msra.mxu0 0
        %443 = vmatprep.subr.bf16.mxu0 0
        %444 = vmatpush1.bf16.xpose.msra.mxu0 0
        %445 = vmatprep.mubr.bf16.mxu0 0
        %446 = vmatmul.mubr.bf16.gmra.mrb[0].mxu0 %v405
        %v447 = vpop.f32.mrb[0].mxu0
        %v448 = vadd.f32 0.0, %v447
        %v449 = vpop.f32.mrb[0].mxu0
        %v450 = vpop.f32.mrb[0].mxu0
        %v451 = vadd.f32 0.0, %v450
        %v452 = vpop.f32.mrb[0].mxu0
        %453 = vmatprep.mubr.bf16.mxu0 0
        %454 = vmatmul.mubr.bf16.gmra.mrb[0].mxu0 %v408
        %v455 = vpop.f32.mrb[0].mxu0
        %v456 = vadd.f32 0.0, %v455
        %v457 = vpop.f32.mrb[0].mxu0
        %v458 = vpop.f32.mrb[0].mxu0
        %v459 = vadd.f32 0.0, %v458
        %v460 = vpop.f32.mrb[0].mxu0
        %461 = vdwg.mxu0
        %v462 = vld [vmem:[#allocation3] sm:$0xff]
        %v463 = vld [vmem:[#allocation3 + $0x8] sm:$0xff]
        %v464 = vld [vmem:[#allocation3 + $0x10] sm:$0xff]
        %v465 = vld [vmem:[#allocation3 + $0x18] sm:$0xff]
        %v466 = vsel %vm403, %v448, -inf
        %467 = vmax.xlane.f32.xlu0 %v466
        %v468 = vpop.xlane.xlu0 %467
        %v469 = vsel %vm403, %v451, -inf
        %470 = vmax.xlane.f32.xlu0 %v469
        %v471 = vpop.xlane.xlu0 %470
        %v472 = vsel %vm403, %v456, -inf
        %473 = vmax.xlane.f32.xlu0 %v472
        %v474 = vpop.xlane.xlu0 %473
        %v475 = vsel %vm403, %v459, -inf
        %476 = vmax.xlane.f32.xlu0 %v475
        %v477 = vpop.xlane.xlu0 %476
        %v478 = vmax.f32 %v462, %v468
        %v479 = vmax.f32 %v463, %v471
        %v480 = vmax.f32 %v464, %v474
        %v481 = vmax.f32 %v465, %v477
        %v482 = vsub.f32 %v462, %v478
        %v483 = vsub.f32 %v463, %v479
        %v484 = vsub.f32 %v464, %v480
        %v485 = vsub.f32 %v465, %v481
        %v486 = vmul.f32 %v482, 1.442695
        %v487 = vpow.pop %v486
        %v488 = vmul.f32 %v483, 1.442695
        %v489 = vpow.pop %v488
        %v490 = vmul.f32 %v484, 1.442695
        %v491 = vpow.pop %v490
        %v492 = vmul.f32 %v485, 1.442695
        %v493 = vpow.pop %v492
        %495 = vset.pattern.permute.xlu0 0
        %496 = vperm.xlu0 %495, %v478
        %v497 = vpop.permute.xlu0 %496
        %500 = vset.pattern.permute.xlu0 0
        %501 = vperm.xlu0 %500, %v479
        %v502 = vpop.permute.xlu0 %501
        %505 = vset.pattern.permute.xlu0 0
        %506 = vperm.xlu0 %505, %v480
        %v507 = vpop.permute.xlu0 %506
        %510 = vset.pattern.permute.xlu0 0
        %511 = vperm.xlu0 %510, %v481
        %v512 = vpop.permute.xlu0 %511
        %v514 = vsub.f32 %v448, %v497
        %v515 = vsub.f32 %v451, %v502
        %v516 = vsub.f32 %v456, %v507
        %v517 = vsub.f32 %v459, %v512
        %v518 = vmul.f32 %v514, 1.442695
        %v519 = vpow.pop %v518
        %v520 = vmul.f32 %v515, 1.442695
        %v521 = vpow.pop %v520
        %v522 = vmul.f32 %v516, 1.442695
        %v523 = vpow.pop %v522
        %v524 = vmul.f32 %v517, 1.442695
        %v525 = vpow.pop %v524
        %v526 = vld [vmem:[#allocation4] sm:$0xff]
        %v527 = vld [vmem:[#allocation4 + $0x8] sm:$0xff]
        %v528 = vld [vmem:[#allocation4 + $0x10] sm:$0xff]
        %v529 = vld [vmem:[#allocation4 + $0x18] sm:$0xff]
        %v530 = vmul.f32 %v487, %v526
        %v531 = vmul.f32 %v489, %v527
        %v532 = vmul.f32 %v491, %v528
        %v533 = vmul.f32 %v493, %v529
        %v534 = vsel %vm403, %v519, 0.0
        %535 = vadd.xlane.f32.xlu0 %v534
        %v536 = vpop.xlane.xlu0 %535
        %v537 = vsel %vm403, %v521, 0.0
        %538 = vadd.xlane.f32.xlu0 %v537
        %v539 = vpop.xlane.xlu0 %538
        %v540 = vsel %vm403, %v523, 0.0
        %541 = vadd.xlane.f32.xlu0 %v540
        %v542 = vpop.xlane.xlu0 %541
        %v543 = vsel %vm403, %v525, 0.0
        %544 = vadd.xlane.f32.xlu0 %v543
        %v545 = vpop.xlane.xlu0 %544
        %v546 = vadd.f32 %v530, %v536
        %v547 = vadd.f32 %v531, %v539
        %v548 = vadd.f32 %v532, %v542
        %v549 = vadd.f32 %v533, %v545
        %vm550 = vcmask 7168
        %551 = vst.msk [vmem:[#allocation4] sm:$0xff] %vm550, %v546
        %552 = vst.msk [vmem:[#allocation4 + $0x8] sm:$0xff] %vm550, %v547
        %553 = vst.msk [vmem:[#allocation4 + $0x10] sm:$0xff] %vm550, %v548
        %554 = vst.msk [vmem:[#allocation4 + $0x18] sm:$0xff] %vm550, %v549
        %v555 = vld [vmem:[#allocation5] sm:$0xff]
        %v556 = vld [vmem:[#allocation5 + $0x8] sm:$0xff]
        %v557 = vld [vmem:[#allocation5 + $0x10] sm:$0xff]
        %v558 = vld [vmem:[#allocation5 + $0x18] sm:$0xff]
        %560 = vset.pattern.permute.xlu0 0
        %561 = vperm.xlu0 %560, %v487
        %v562 = vpop.permute.xlu0 %561
        %565 = vset.pattern.permute.xlu0 0
        %566 = vperm.xlu0 %565, %v489
        %v567 = vpop.permute.xlu0 %566
        %570 = vset.pattern.permute.xlu0 0
        %571 = vperm.xlu0 %570, %v491
        %v572 = vpop.permute.xlu0 %571
        %575 = vset.pattern.permute.xlu0 0
        %576 = vperm.xlu0 %575, %v493
        %v577 = vpop.permute.xlu0 %576
        %v579 = vmul.f32 %v562, %v555
        %v580 = vmul.f32 %v567, %v556
        %v581 = vmul.f32 %v572, %v557
        %v582 = vmul.f32 %v577, %v558
        %v583 = vpack.c.bf16 %v521, %v519
        %v584 = vpack.c.bf16 %v525, %v523
        %v586 = vsel %vm403, %v583, 0
        %v589 = vsel %vm403, %v584, 0
        %vm591 = vcmask 1043456
        %v593 = vsel %vm591, %v400, 0
        %595 = vmatprep.subr.bf16.mxu0 0
        %596 = vmatpush1.bf16.msra.mxu0 %v593
        %597 = vmatprep.subr.bf16.mxu0 0
        %598 = vmatpush1.bf16.msra.mxu0 0
        %599 = vmatprep.subr.bf16.mxu0 0
        %600 = vmatpush1.bf16.msra.mxu0 0
        %601 = vmatprep.subr.bf16.mxu0 0
        %602 = vmatpush1.bf16.msra.mxu0 0
        %603 = vmatprep.subr.bf16.mxu0 0
        %604 = vmatpush1.bf16.msra.mxu0 0
        %605 = vmatprep.subr.bf16.mxu0 0
        %606 = vmatpush1.bf16.msra.mxu0 0
        %607 = vmatprep.subr.bf16.mxu0 0
        %608 = vmatpush1.bf16.msra.mxu0 0
        %609 = vmatprep.subr.bf16.mxu0 0
        %610 = vmatpush1.bf16.msra.mxu0 0
        %611 = vmatprep.subr.bf16.mxu0 0
        %612 = vmatpush1.bf16.msra.mxu0 0
        %613 = vmatprep.subr.bf16.mxu0 0
        %614 = vmatpush1.bf16.msra.mxu0 0
        %615 = vmatprep.subr.bf16.mxu0 0
        %616 = vmatpush1.bf16.msra.mxu0 0
        %617 = vmatprep.subr.bf16.mxu0 0
        %618 = vmatpush1.bf16.msra.mxu0 0
        %619 = vmatprep.subr.bf16.mxu0 0
        %620 = vmatpush1.bf16.msra.mxu0 0
        %621 = vmatprep.subr.bf16.mxu0 0
        %622 = vmatpush1.bf16.msra.mxu0 0
        %623 = vmatprep.subr.bf16.mxu0 0
        %624 = vmatpush1.bf16.msra.mxu0 0
        %625 = vmatprep.subr.bf16.mxu0 0
        %626 = vmatpush1.bf16.msra.mxu0 0
        %627 = vmatprep.mubr.bf16.mxu0 0
        %628 = vmatmul.mubr.bf16.gmra.mrb[0].mxu0 %v586
        %v629 = vpop.f32.mrb[0].mxu0
        %v630 = vadd.f32 0.0, %v629
        %v631 = vpop.f32.mrb[0].mxu0
        %v632 = vpop.f32.mrb[0].mxu0
        %v633 = vadd.f32 0.0, %v632
        %v634 = vpop.f32.mrb[0].mxu0
        %635 = vmatprep.mubr.bf16.mxu0 0
        %636 = vmatmul.mubr.bf16.gmra.mrb[0].mxu0 %v589
        %v637 = vpop.f32.mrb[0].mxu0
        %v638 = vadd.f32 0.0, %v637
        %v639 = vpop.f32.mrb[0].mxu0
        %v640 = vpop.f32.mrb[0].mxu0
        %v641 = vadd.f32 0.0, %v640
        %v642 = vpop.f32.mrb[0].mxu0
        %643 = vdwg.mxu0
        %v644 = vadd.f32 %v579, %v630
        %v645 = vadd.f32 %v580, %v633
        %v646 = vadd.f32 %v581, %v638
        %v647 = vadd.f32 %v582, %v641
        %648 = vst.msk [vmem:[#allocation5] sm:$0xff] %vm403, %v644
        %649 = vst.msk [vmem:[#allocation5 + $0x8] sm:$0xff] %vm403, %v645
        %650 = vst.msk [vmem:[#allocation5 + $0x10] sm:$0xff] %vm403, %v646
        %651 = vst.msk [vmem:[#allocation5 + $0x18] sm:$0xff] %vm403, %v647
        %652 = vst.msk [vmem:[#allocation3] sm:$0xff] %vm550, %v478
        %653 = vst.msk [vmem:[#allocation3 + $0x8] sm:$0xff] %vm550, %v479
        %654 = vst.msk [vmem:[#allocation3 + $0x10] sm:$0xff] %vm550, %v480
        %655 = vst.msk [vmem:[#allocation3 + $0x18] sm:$0xff] %vm550, %v481
        // Predicated region
        $region61: #{tpu_custom_call.1} parent=39 // pred_check
          %p656 = pneg %p360
        $region62: #{tpu_custom_call.1} parent=39 // pred_check_branch
          %658 = sbr.rel (%p656) target = $region64
        $region63: #{tpu_custom_call.1} parent=39 // pred_region
          %v659 = vld [vmem:[#allocation5] sm:$0xff]
          %v660 = vld [vmem:[#allocation5 + $0x8] sm:$0xff]
          %v661 = vld [vmem:[#allocation5 + $0x10] sm:$0xff]
          %v662 = vld [vmem:[#allocation5 + $0x18] sm:$0xff]
          %v663 = vld [vmem:[#allocation4] sm:$0xff]
          %v664 = vld [vmem:[#allocation4 + $0x8] sm:$0xff]
          %v665 = vld [vmem:[#allocation4 + $0x10] sm:$0xff]
          %v666 = vld [vmem:[#allocation4 + $0x18] sm:$0xff]
          %v667 = vrcp.pop %v663
          %v668 = vrcp.pop %v664
          %v669 = vrcp.pop %v665
          %v670 = vrcp.pop %v666
          %672 = vset.pattern.permute.xlu0 0
          %673 = vperm.xlu0 %672, %v667
          %v674 = vpop.permute.xlu0 %673
          %677 = vset.pattern.permute.xlu0 0
          %678 = vperm.xlu0 %677, %v668
          %v679 = vpop.permute.xlu0 %678
          %682 = vset.pattern.permute.xlu0 0
          %683 = vperm.xlu0 %682, %v669
          %v684 = vpop.permute.xlu0 %683
          %687 = vset.pattern.permute.xlu0 0
          %688 = vperm.xlu0 %687, %v670
          %v689 = vpop.permute.xlu0 %688
          %v691 = vmul.f32 %v659, %v674
          %v692 = vmul.f32 %v660, %v679
          %v693 = vmul.f32 %v661, %v684
          %v694 = vmul.f32 %v662, %v689
          %v695 = vpack.c.bf16 %v691, %v691
          %v696 = vld [vmem:[#allocation12] sm:$0xf]
          %v697 = vpack.c.bf16 %v692, %v692
          %s698 = scalar_lea.vmem [#allocation12], 4
          %v699 = vld [vmem:[%s698] sm:$0xf]
          %v701 = vsel %vm403, %v697, 0
          %v704 = vsel %vm591, %v699, 0
          %706 = vmatprep.subr.bf16.mxu0 0
          %707 = vmatpush1.bf16.msra.mxu0 %v704
          %708 = vmatprep.subr.bf16.mxu0 0
          %709 = vmatpush1.bf16.msra.mxu0 0
          %710 = vmatprep.subr.bf16.mxu0 0
          %711 = vmatpush1.bf16.msra.mxu0 0
          %712 = vmatprep.subr.bf16.mxu0 0
          %713 = vmatpush1.bf16.msra.mxu0 0
          %714 = vmatprep.subr.bf16.mxu0 0
          %715 = vmatpush1.bf16.msra.mxu0 0
          %716 = vmatprep.subr.bf16.mxu0 0
          %717 = vmatpush1.bf16.msra.mxu0 0
          %718 = vmatprep.subr.bf16.mxu0 0
          %719 = vmatpush1.bf16.msra.mxu0 0
          %720 = vmatprep.subr.bf16.mxu0 0
          %721 = vmatpush1.bf16.msra.mxu0 0
          %722 = vmatprep.subr.bf16.mxu0 0
          %723 = vmatpush1.bf16.msra.mxu0 0
          %724 = vmatprep.subr.bf16.mxu0 0
          %725 = vmatpush1.bf16.msra.mxu0 0
          %726 = vmatprep.subr.bf16.mxu0 0
          %727 = vmatpush1.bf16.msra.mxu0 0
          %728 = vmatprep.subr.bf16.mxu0 0
          %729 = vmatpush1.bf16.msra.mxu0 0
          %730 = vmatprep.subr.bf16.mxu0 0
          %731 = vmatpush1.bf16.msra.mxu0 0
          %732 = vmatprep.subr.bf16.mxu0 0
          %733 = vmatpush1.bf16.msra.mxu0 0
          %734 = vmatprep.subr.bf16.mxu0 0
          %735 = vmatpush1.bf16.msra.mxu0 0
          %736 = vmatprep.subr.bf16.mxu0 0
          %737 = vmatpush1.bf16.msra.mxu0 0
          %738 = vmatprep.mubr.bf16.mxu0 0
          %739 = vmatmul.mubr.bf16.gmra.mrb[0].mxu0 %v701
          %v740 = vpop.f32.mrb[0].mxu0
          %v741 = vadd.f32 0.0, %v740
          %v742 = vpop.f32.mrb[0].mxu0
          %v743 = vpop.f32.mrb[0].mxu0
          %v744 = vpop.f32.mrb[0].mxu0
          %745 = vdwg.mxu0
          %v747 = vsel %vm403, %v695, 0
          %v750 = vsel %vm591, %v696, 0
          %752 = vmatprep.subr.bf16.mxu0 0
          %753 = vmatpush1.bf16.msra.mxu0 %v750
          %754 = vmatprep.subr.bf16.mxu0 0
          %755 = vmatpush1.bf16.msra.mxu0 0
          %756 = vmatprep.subr.bf16.mxu0 0
          %757 = vmatpush1.bf16.msra.mxu0 0
          %758 = vmatprep.subr.bf16.mxu0 0
          %759 = vmatpush1.bf16.msra.mxu0 0
          %760 = vmatprep.subr.bf16.mxu0 0
          %761 = vmatpush1.bf16.msra.mxu0 0
          %762 = vmatprep.subr.bf16.mxu0 0
          %763 = vmatpush1.bf16.msra.mxu0 0
          %764 = vmatprep.subr.bf16.mxu0 0
          %765 = vmatpush1.bf16.msra.mxu0 0
          %766 = vmatprep.subr.bf16.mxu0 0
          %767 = vmatpush1.bf16.msra.mxu0 0
          %768 = vmatprep.subr.bf16.mxu0 0
          %769 = vmatpush1.bf16.msra.mxu0 0
          %770 = vmatprep.subr.bf16.mxu0 0
          %771 = vmatpush1.bf16.msra.mxu0 0
          %772 = vmatprep.subr.bf16.mxu0 0
          %773 = vmatpush1.bf16.msra.mxu0 0
          %774 = vmatprep.subr.bf16.mxu0 0
          %775 = vmatpush1.bf16.msra.mxu0 0
          %776 = vmatprep.subr.bf16.mxu0 0
          %777 = vmatpush1.bf16.msra.mxu0 0
          %778 = vmatprep.subr.bf16.mxu0 0
          %779 = vmatpush1.bf16.msra.mxu0 0
          %780 = vmatprep.subr.bf16.mxu0 0
          %781 = vmatpush1.bf16.msra.mxu0 0
          %782 = vmatprep.subr.bf16.mxu0 0
          %783 = vmatpush1.bf16.msra.mxu0 0
          %784 = vmatprep.mubr.bf16.mxu0 0
          %785 = vmatmul.mubr.bf16.gmra.mrb[0].mxu0 %v747
          %v786 = vpop.f32.mrb[0].mxu0
          %v787 = vadd.f32 %v741, %v786
          %v788 = vpop.f32.mrb[0].mxu0
          %v789 = vpop.f32.mrb[0].mxu0
          %v790 = vpop.f32.mrb[0].mxu0
          %791 = vdwg.mxu0
          %v792 = vpack.c.bf16 %v693, %v693
          %s793 = scalar_lea.vmem [#allocation12], 8
          %v794 = vld [vmem:[%s793] sm:$0xf]
          %v796 = vsel %vm403, %v792, 0
          %v799 = vsel %vm591, %v794, 0
          %801 = vmatprep.subr.bf16.mxu0 0
          %802 = vmatpush1.bf16.msra.mxu0 %v799
          %803 = vmatprep.subr.bf16.mxu0 0
          %804 = vmatpush1.bf16.msra.mxu0 0
          %805 = vmatprep.subr.bf16.mxu0 0
          %806 = vmatpush1.bf16.msra.mxu0 0
          %807 = vmatprep.subr.bf16.mxu0 0
          %808 = vmatpush1.bf16.msra.mxu0 0
          %809 = vmatprep.subr.bf16.mxu0 0
          %810 = vmatpush1.bf16.msra.mxu0 0
          %811 = vmatprep.subr.bf16.mxu0 0
          %812 = vmatpush1.bf16.msra.mxu0 0
          %813 = vmatprep.subr.bf16.mxu0 0
          %814 = vmatpush1.bf16.msra.mxu0 0
          %815 = vmatprep.subr.bf16.mxu0 0
          %816 = vmatpush1.bf16.msra.mxu0 0
          %817 = vmatprep.subr.bf16.mxu0 0
          %818 = vmatpush1.bf16.msra.mxu0 0
          %819 = vmatprep.subr.bf16.mxu0 0
          %820 = vmatpush1.bf16.msra.mxu0 0
          %821 = vmatprep.subr.bf16.mxu0 0
          %822 = vmatpush1.bf16.msra.mxu0 0
          %823 = vmatprep.subr.bf16.mxu0 0
          %824 = vmatpush1.bf16.msra.mxu0 0
          %825 = vmatprep.subr.bf16.mxu0 0
          %826 = vmatpush1.bf16.msra.mxu0 0
          %827 = vmatprep.subr.bf16.mxu0 0
          %828 = vmatpush1.bf16.msra.mxu0 0
          %829 = vmatprep.subr.bf16.mxu0 0
          %830 = vmatpush1.bf16.msra.mxu0 0
          %831 = vmatprep.subr.bf16.mxu0 0
          %832 = vmatpush1.bf16.msra.mxu0 0
          %833 = vmatprep.mubr.bf16.mxu0 0
          %834 = vmatmul.mubr.bf16.gmra.mrb[0].mxu0 %v796
          %v835 = vpop.f32.mrb[0].mxu0
          %v836 = vadd.f32 0.0, %v835
          %v837 = vpop.f32.mrb[0].mxu0
          %v838 = vpop.f32.mrb[0].mxu0
          %v839 = vpop.f32.mrb[0].mxu0
          %840 = vdwg.mxu0
          %v841 = vadd.f32 %v787, %v836
          %v842 = vpack.c.bf16 %v694, %v694
          %s843 = scalar_lea.vmem [#allocation12], 12
          %v844 = vld [vmem:[%s843] sm:$0xf]
          %v846 = vsel %vm403, %v842, 0
          %v849 = vsel %vm591, %v844, 0
          %851 = vmatprep.subr.bf16.mxu0 0
          %852 = vmatpush1.bf16.msra.mxu0 %v849
          %853 = vmatprep.subr.bf16.mxu0 0
          %854 = vmatpush1.bf16.msra.mxu0 0
          %855 = vmatprep.subr.bf16.mxu0 0
          %856 = vmatpush1.bf16.msra.mxu0 0
          %857 = vmatprep.subr.bf16.mxu0 0
          %858 = vmatpush1.bf16.msra.mxu0 0
          %859 = vmatprep.subr.bf16.mxu0 0
          %860 = vmatpush1.bf16.msra.mxu0 0
          %861 = vmatprep.subr.bf16.mxu0 0
          %862 = vmatpush1.bf16.msra.mxu0 0
          %863 = vmatprep.subr.bf16.mxu0 0
          %864 = vmatpush1.bf16.msra.mxu0 0
          %865 = vmatprep.subr.bf16.mxu0 0
          %866 = vmatpush1.bf16.msra.mxu0 0
          %867 = vmatprep.subr.bf16.mxu0 0
          %868 = vmatpush1.bf16.msra.mxu0 0
          %869 = vmatprep.subr.bf16.mxu0 0
          %870 = vmatpush1.bf16.msra.mxu0 0
          %871 = vmatprep.subr.bf16.mxu0 0
          %872 = vmatpush1.bf16.msra.mxu0 0
          %873 = vmatprep.subr.bf16.mxu0 0
          %874 = vmatpush1.bf16.msra.mxu0 0
          %875 = vmatprep.subr.bf16.mxu0 0
          %876 = vmatpush1.bf16.msra.mxu0 0
          %877 = vmatprep.subr.bf16.mxu0 0
          %878 = vmatpush1.bf16.msra.mxu0 0
          %879 = vmatprep.subr.bf16.mxu0 0
          %880 = vmatpush1.bf16.msra.mxu0 0
          %881 = vmatprep.subr.bf16.mxu0 0
          %882 = vmatpush1.bf16.msra.mxu0 0
          %883 = vmatprep.mubr.bf16.mxu0 0
          %884 = vmatmul.mubr.bf16.gmra.mrb[0].mxu0 %v846
          %v885 = vpop.f32.mrb[0].mxu0
          %v886 = vadd.f32 0.0, %v885
          %v887 = vpop.f32.mrb[0].mxu0
          %v888 = vpop.f32.mrb[0].mxu0
          %v889 = vpop.f32.mrb[0].mxu0
          %890 = vdwg.mxu0
          %v891 = vadd.f32 %v841, %v886
          %v892 = vld [vmem:[%s4] sm:$0x1]
          %v894 = vlaneseq
          %v895 = vshrl.u32 %v894, 7
          %v896 = vsub.s32 0, %v895
          %v897 = vrot.slane %v892, %v896
          %v899 = vadd.f32 %v891, %v897
          %vm900 = vcmask 261120
          %901 = vst.msk [vmem:[%s358] sm:$0xff] %vm900, %v899
        $region64: #{tpu_custom_call.1} parent=39 // pred_fallthru
          _
        %s902 = sand.u32 %s181, 1
        %s903 = scalar_lea.sflag [#allocation8], %s902
        %s904 = sand.u32 %s181, 1
        %s905 = smul.addr %s904, 8
        %s906 = scalar_lea.vmem [#allocation14], %s905
        // Predicated region
        $region65: #{tpu_custom_call.1} parent=39 // pred_check
          %p907 = pneg %p191
        $region66: #{tpu_custom_call.1} parent=39 // pred_check_branch
          %909 = sbr.rel (%p907) target = $region68
        $region67: #{tpu_custom_call.1} parent=39 // pred_region
          %s911 = ssub.s32 128, 128
          %912 = vsyncadd %s903, %s911
          %s913 = sadd.s32 %s32, %s31
          %s914 = smul.addr %s913, 128
          %s915 = scalar_lea.hbm %s5, %s914
          %s917 = sshll.u32 %s906, 4
          %s918 = int_to_ptr.vmem [resolvable:$true] %s917
          %920 = dma.vmem_to_hbm [thread:$0]  %s918, 128, %s915, %s903
        $region68: #{tpu_custom_call.1} parent=39 // pred_fallthru
          _
      $region40: #{tpu_custom_call.1} parent=5 // pred_fallthru
        _
      %p921 = scmp.le.s32.totalorder 2, %s21
      // Predicated region
      $region69: #{tpu_custom_call.1} parent=5 // pred_check
        %p922 = pneg %p921
      $region70: #{tpu_custom_call.1} parent=5 // pred_check_branch
        %924 = sbr.rel (%p922) target = $region72
      $region71: #{tpu_custom_call.1} parent=5 // pred_region
        %s925 = ssub.s32 %s21, 2
        // Predicated region
        $region73: #{tpu_custom_call.1} parent=71 // pred_check
          %p926 = pneg %p197
        $region74: #{tpu_custom_call.1} parent=71 // pred_check_branch
          %928 = sbr.rel (%p926) target = $region76
        $region75: #{tpu_custom_call.1} parent=71 // pred_region
          %s929 = sand.u32 %s182, 1
          %s930 = scalar_lea.sflag [#allocation8], %s929
          %s931 = sand.u32 %s182, 1
          %s932 = smul.addr %s931, 8
          %s933 = scalar_lea.vmem [#allocation14], %s932
          %934 = dma.done %s930, 128
        $region76: #{tpu_custom_call.1} parent=71 // pred_fallthru
          _
      $region72: #{tpu_custom_call.1} parent=5 // pred_fallthru
        _
    $region6: #{tpu_custom_call.1} parent=1 // loop_footer
      %s25 = sadd.s32 1, %s21
    $region7: #{tpu_custom_call.1} parent=1 // loop_footer_branch
      %20 = sbr.rel target = $region3
    $region8: #{tpu_custom_call.1} parent=1 // loop_exit
      _
    %935 = vsyncpa [#allocation7], 1
    %s936 = scalar_lea.sflag [#allocation7], 1
    %937 = vsyncpa %s936, 1
    %938 = vsyncpa [#allocation10], 1
    %s939 = scalar_lea.sflag [#allocation10], 1
    %940 = vsyncpa %s939, 1
    %941 = vsyncpa [#allocation13], 1
    %942 = vsyncpa [#allocation8], 1
    %s943 = scalar_lea.sflag [#allocation8], 1
    %944 = vsyncpa %s943, 1

</llo_original>
